<compile_context>
chip_gen: v7x
topology: tpu7x:2x2x1
jax: 0.10.0
libtpu: 0.0.40
codegen_flags: <defaults>
</compile_context>

<pallas_src>
import functools

import jax
import jax.numpy as jnp
from jax.experimental import pallas as pl
from jax.experimental.pallas import tpu as pltpu


def _round_up(x, m):
    return (x + m - 1) // m * m


def _bottleneck_kernel(x_ref, w1_ref, w3_ref, aux_ref, b3_ref, o_ref, *,
                       L, mxu_dtype):
    """One grid step processes a (R, Cin_p) slab holding R // L sequences.

    aux rows (expanded-channel space, width Cexp_p):
      0..2 = depthwise taps pre-scaled by BN1, 3 = conv1 bias + BN0 shift,
      4 = conv2 bias + BN1 shift, 5..7 = zero padding.
    b3_ref = conv3 bias, width Cin_p (== Cout_p on the residual path).
    """
    x = x_ref[...]                                   # (R, Cin_p) f32
    aux = aux_ref[...]                               # (8, Cexp_p) f32

    # ---- conv1 (1x1) with BN0 folded into the weight, + ReLU -------------
    h = jnp.dot(x.astype(mxu_dtype), w1_ref[...].astype(mxu_dtype),
                preferred_element_type=jnp.float32)  # (R, Cexp_p)
    h = jnp.maximum(h + aux[3:4, :], 0.0)

    # ---- depthwise conv (k=3, pad=1, stride=1) with BN1 folded, + ReLU ---
    # The slab stacks R // L independent length-L sequences; shifted copies
    # are masked at sequence boundaries so taps never cross batch elements.
    # jnp.roll keeps this portable to interpret mode; when compiled natively
    # the rotate maps onto the XLU (a slot the matmuls do not use).
    R = h.shape[0]
    pos = jax.lax.broadcasted_iota(jnp.int32, (R, 1), 0) % L
    h_prev = jnp.where(pos == 0, 0.0, jnp.roll(h, 1, axis=0))       # h[i-1]
    h_next = jnp.where(pos == L - 1, 0.0, jnp.roll(h, -1, axis=0))  # h[i+1]
    c2 = (h_prev * aux[0:1, :] + h * aux[1:2, :] + h_next * aux[2:3, :]
          + aux[4:5, :])
    c2 = jnp.maximum(c2, 0.0)

    # ---- conv3 (1x1) + bias + residual (dropout = identity in eval) ------
    y = jnp.dot(c2.astype(mxu_dtype), w3_ref[...].astype(mxu_dtype),
                preferred_element_type=jnp.float32)  # (R, Cin_p)
    o_ref[...] = x + y + b3_ref[...]


def fold_params(params, cin_p, cexp_p):
    """Fold eval-mode BN + conv biases into weights; pad channels lane-dense."""
    (w1, b1, s0, t0, w2, b2, s1, t1, w3, b3) = params
    Cin, Cexp = w1.shape
    Cout = w3.shape[1]

    w1f = w1 * s0                     # (Cin, Cexp): BN0 scale folded per column
    t0f = b1 * s0 + t0                # (1, Cexp):  conv1 bias + BN0 shift
    w2f = w2 * s1                     # (3, Cexp):  BN1 scale folded per tap
    t1f = b2 * s1 + t1                # (1, Cexp):  conv2 bias + BN1 shift

    w1p = jnp.pad(w1f, ((0, cin_p - Cin), (0, cexp_p - Cexp)))
    w3p = jnp.pad(w3, ((0, cexp_p - Cexp), (0, cin_p - Cout)))
    aux = jnp.zeros((8, cexp_p), jnp.float32)
    aux = aux.at[0:3, :Cexp].set(w2f)
    aux = aux.at[3, :Cexp].set(t0f[0])
    aux = aux.at[4, :Cexp].set(t1f[0])
    b3p = jnp.zeros((1, cin_p), jnp.float32).at[0, :Cout].set(b3[0])
    return w1p, w3p, aux, b3p


def _pick_num_blocks(N, L, cin_p, cexp_p, vmem_budget_bytes=12 << 20):
    """Choose the row-block count for the 1-D grid.

    Blocks cover whole sequences (boundary masks need pos % L to be valid),
    have a row count divisible by 8 unless a single full-extent block is
    used, fit a conservative VMEM budget (double-buffered in/out slabs plus
    f32 intermediates), and prefer >= 2 blocks so both v7x TensorCores /
    the DMA pipeline get work.
    """
    bytes_per_seq = 4 * L * (2 * 2 * cin_p + 3 * cexp_p)
    valid = [d for d in range(1, N + 1)
             if N % d == 0 and (d == 1 or ((N // d) * L) % 8 == 0)]
    nb = next((d for d in valid
               if (N // d) * bytes_per_seq <= vmem_budget_bytes), valid[-1])
    if nb == 1:
        nb = next((d for d in valid if d >= 2), 1)
    return nb


def bottleneck_forward_nlc(x_nlc, params, *, mxu_dtype=jnp.float32):
    """Channels-last entry point: x_nlc (N, L, Cin) -> (N, L, Cout)."""
    N, L, Cin = x_nlc.shape
    Cexp = params[0].shape[1]
    Cout = params[8].shape[1]
    assert Cin == Cout, "stride==1 residual path requires in_channel == out_channel"

    cin_p = _round_up(Cin, 128)       # lane-dense in/out channels
    cexp_p = _round_up(Cexp, 128)     # lane-dense expanded channels
    w1p, w3p, aux, b3p = fold_params(params, cin_p, cexp_p)

    # Flatten to (N*L, Cin_p) channels-last slab (pad lanes are exact zeros).
    x2d = jnp.pad(x_nlc, ((0, 0), (0, 0), (0, cin_p - Cin))).reshape(N * L, cin_p)

    nblocks = _pick_num_blocks(N, L, cin_p, cexp_p)
    rows = (N // nblocks) * L

    kernel = functools.partial(_bottleneck_kernel, L=L, mxu_dtype=mxu_dtype)
    out2d = pl.pallas_call(
        kernel,
        out_shape=jax.ShapeDtypeStruct((N * L, cin_p), jnp.float32),
        grid_spec=pltpu.PrefetchScalarGridSpec(
            num_scalar_prefetch=0,
            grid=(nblocks,),
            in_specs=[
                pl.BlockSpec((rows, cin_p), lambda i: (i, 0)),    # activations
                pl.BlockSpec((cin_p, cexp_p), lambda i: (0, 0)),  # w1 (BN0 folded)
                pl.BlockSpec((cexp_p, cin_p), lambda i: (0, 0)),  # w3
                pl.BlockSpec((8, cexp_p), lambda i: (0, 0)),      # taps + shifts
                pl.BlockSpec((1, cin_p), lambda i: (0, 0)),       # conv3 bias
            ],
            out_specs=pl.BlockSpec((rows, cin_p), lambda i: (i, 0)),
        ),
        compiler_params=pltpu.CompilerParams(
            dimension_semantics=("parallel",)),
    )(x2d, w1p, w3p, aux, b3p)

    return out2d.reshape(N, L, cin_p)[:, :, :Cout]


def bottleneck_forward(x_ncl, params, *, mxu_dtype=jnp.float32):
    """PyTorch-layout wrapper: x (N, Cin, L) -> (N, Cout, L).

    The two transposes are layout plumbing for the NCL interface only;
    production callers should use bottleneck_forward_nlc (channels-last)
    directly and skip them.
    """
    out_nlc = bottleneck_forward_nlc(jnp.transpose(x_ncl, (0, 2, 1)), params,
                                     mxu_dtype=mxu_dtype)
    return jnp.transpose(out_nlc, (0, 2, 1))


def _reference(x_ncl, params):
    """Pure-JAX reference (unfolded math) for validation."""
    (w1, b1, s0, t0, w2, b2, s1, t1, w3, b3) = params
    x = jnp.transpose(x_ncl, (0, 2, 1))              # (N, L, Cin)
    h = jnp.maximum((x @ w1 + b1) * s0 + t0, 0.0)
    hp = jnp.pad(h, ((0, 0), (1, 1), (0, 0)))
    c2 = hp[:, :-2] * w2[0] + hp[:, 1:-1] * w2[1] + hp[:, 2:] * w2[2] + b2
    c2 = jnp.maximum(c2 * s1 + t1, 0.0)
    y = c2 @ w3 + b3
    return jnp.transpose(x + y, (0, 2, 1))


def make_params(key, in_channel, out_channel, expansion):
    Cin, Cexp, Cout = in_channel, in_channel * expansion, out_channel
    ks = jax.random.split(key, 12)
    w1 = jax.random.normal(ks[0], (Cin, Cexp), jnp.float32) * 0.1
    b1 = jax.random.normal(ks[1], (1, Cexp), jnp.float32) * 0.1
    w2 = jax.random.normal(ks[2], (3, Cexp), jnp.float32) * 0.1   # depthwise taps
    b2 = jax.random.normal(ks[3], (1, Cexp), jnp.float32) * 0.1
    w3 = jax.random.normal(ks[4], (Cexp, Cout), jnp.float32) * 0.1
    b3 = jax.random.normal(ks[5], (1, Cout), jnp.float32) * 0.1
    # BatchNorm (eval): s = gamma / sqrt(var + eps), t = beta - mean * s.
    eps = 1e-5
    def bn(kg, kb, km, kv):
        gamma = 1.0 + 0.1 * jax.random.normal(kg, (1, Cexp), jnp.float32)
        beta = 0.1 * jax.random.normal(kb, (1, Cexp), jnp.float32)
        mean = 0.1 * jax.random.normal(km, (1, Cexp), jnp.float32)
        var = jnp.abs(1.0 + 0.1 * jax.random.normal(kv, (1, Cexp), jnp.float32))
        s = gamma / jnp.sqrt(var + eps)
        t = beta - mean * s
        return s, t
    s0, t0 = bn(ks[6], ks[7], ks[8], ks[9])
    s1, t1 = bn(ks[10], ks[11], ks[6], ks[7])
    return (w1, b1, s0, t0, w2, b2, s1, t1, w3, b3)


if __name__ == "__main__":
    # Module config: in_channel=4, out_channel=4, expansion=4, stride=1, pad=1
    N, Cin, L, expansion = 2, 4, 16, 4
    Cout = Cin  # stride==1 residual path requires out_channel == in_channel

    key = jax.random.PRNGKey(0)
    kx, kp = jax.random.split(key)
    x = jax.random.normal(kx, (N, Cin, L), jnp.float32)   # NCL like PyTorch
    params = make_params(kp, Cin, Cout, expansion)

    out = jax.block_until_ready(bottleneck_forward(x, params))
    ref = _reference(x, params)

    assert out.shape == (N, Cout, L)
    assert jnp.allclose(out, ref, atol=1e-3, rtol=1e-3), (
        "max abs err = %f" % float(jnp.max(jnp.abs(out - ref))))
    print("KERNEL_OK")
</pallas_src>

<mosaic_0001>
module attributes {stable_mosaic.version = 11 : i64} {
  func.func @_bottleneck_kernel(%arg0: i32, %arg1: memref<16x128xf32, #tpu.memory_space<vmem>>, %arg2: memref<128x128xf32, #tpu.memory_space<vmem>>, %arg3: memref<128x128xf32, #tpu.memory_space<vmem>>, %arg4: memref<8x128xf32, #tpu.memory_space<vmem>>, %arg5: memref<1x128xf32, #tpu.memory_space<vmem>>, %arg6: memref<16x128xf32, #tpu.memory_space<vmem>>) attributes {dimension_semantics = [#tpu.dimension_semantics<parallel>], iteration_bounds = array<i64: 2>, scalar_prefetch = 0 : i64, scratch_operands = 0 : i64, tpu.core_type = #tpu.core_type<tc>, window_params = [{transform_indices = @transform_0, window_bounds = array<i64: 16, 128>}, {pipeline_mode = #tpu.pipeline_mode<synchronous>, transform_indices = @transform_1, window_bounds = array<i64: 128, 128>}, {pipeline_mode = #tpu.pipeline_mode<synchronous>, transform_indices = @transform_2, window_bounds = array<i64: 128, 128>}, {pipeline_mode = #tpu.pipeline_mode<synchronous>, transform_indices = @transform_3, window_bounds = array<i64: 8, 128>}, {pipeline_mode = #tpu.pipeline_mode<synchronous>, transform_indices = @transform_4, window_bounds = array<i64: 1, 128>}, {transform_indices = @transform_5, window_bounds = array<i64: 16, 128>}]} {
    %c0 = arith.constant 0 : index
    %c0_0 = arith.constant 0 : index
    %0 = vector.load %arg1[%c0, %c0_0] : memref<16x128xf32, #tpu.memory_space<vmem>>, vector<16x128xf32>
    %c0_1 = arith.constant 0 : index
    %c0_2 = arith.constant 0 : index
    %1 = vector.load %arg4[%c0_1, %c0_2] : memref<8x128xf32, #tpu.memory_space<vmem>>, vector<8x128xf32>
    %c0_3 = arith.constant 0 : index
    %c0_4 = arith.constant 0 : index
    %2 = vector.load %arg2[%c0_3, %c0_4] : memref<128x128xf32, #tpu.memory_space<vmem>>, vector<128x128xf32>
    %cst = arith.constant dense<0.000000e+00> : vector<16x128xf32>
    %3 = tpu.matmul %0, %2, %cst {dimension_numbers = #tpu.dot_dimension_numbers<[1], [0], [0], [1], [0, 0, 1, 1], [], []>} : vector<16x128xf32>, vector<128x128xf32>, vector<16x128xf32> -> vector<16x128xf32>
    %4 = vector.extract_strided_slice %1 {offsets = [3, 0], sizes = [1, 128], strides = [1, 1]} : vector<8x128xf32> to vector<1x128xf32>
    %5 = vector.broadcast %4 : vector<1x128xf32> to vector<16x128xf32>
    %6 = arith.addf %3, %5 : vector<16x128xf32>
    %cst_5 = arith.constant 0.000000e+00 : f32
    %7 = vector.broadcast %cst_5 : f32 to vector<16x128xf32>
    %8 = arith.maximumf %6, %7 : vector<16x128xf32>
    %9 = tpu.iota {dimensions = array<i32: 0>} : vector<16x1xi32>
    %c16_i32 = arith.constant 16 : i32
    %c0_i32 = arith.constant 0 : i32
    %10 = arith.cmpi eq, %c16_i32, %c0_i32 : i32
    %c1_i32 = arith.constant 1 : i32
    %11 = arith.select %10, %c1_i32, %c16_i32 : i32
    %12 = vector.broadcast %11 : i32 to vector<16x1xi32>
    %13 = arith.remsi %9, %12 : vector<16x1xi32>
    %c0_i32_6 = arith.constant 0 : i32
    %14 = vector.broadcast %c0_i32_6 : i32 to vector<16x1xi32>
    %15 = arith.cmpi ne, %13, %14 : vector<16x1xi32>
    %c0_i32_7 = arith.constant 0 : i32
    %16 = vector.broadcast %c0_i32_7 : i32 to vector<16x1xi32>
    %17 = arith.cmpi slt, %13, %16 : vector<16x1xi32>
    %c0_i32_8 = arith.constant 0 : i32
    %18 = arith.cmpi slt, %11, %c0_i32_8 : i32
    %19 = vector.broadcast %18 : i1 to vector<16x1xi1>
    %20 = vector.broadcast %19 : vector<16x1xi1> to vector<16x1xi1>
    %21 = arith.xori %17, %20 : vector<16x1xi1>
    %22 = arith.andi %21, %15 : vector<16x1xi1>
    %23 = vector.broadcast %11 : i32 to vector<16x1xi32>
    %24 = arith.addi %13, %23 : vector<16x1xi32>
    %25 = arith.select %22, %24, %13 : vector<16x1xi1>, vector<16x1xi32>
    %c0_i32_9 = arith.constant 0 : i32
    %26 = vector.broadcast %c0_i32_9 : i32 to vector<16x1xi32>
    %27 = arith.cmpi eq, %25, %26 : vector<16x1xi32>
    %28 = vector.extract_strided_slice %8 {offsets = [15, 0], sizes = [1, 128], strides = [1, 1]} : vector<16x128xf32> to vector<1x128xf32>
    %29 = vector.extract_strided_slice %8 {offsets = [0, 0], sizes = [15, 128], strides = [1, 1]} : vector<16x128xf32> to vector<15x128xf32>
    %30 = tpu.concatenate %28, %29 in 0 : vector<1x128xf32>, vector<15x128xf32> -> vector<16x128xf32>
    %cst_10 = arith.constant 0.000000e+00 : f32
    %31 = vector.shape_cast %27 : vector<16x1xi1> to vector<16x1xi1>
    %32 = vector.broadcast %31 : vector<16x1xi1> to vector<16x128xi1>
    %33 = vector.broadcast %cst_10 : f32 to vector<16x128xf32>
    %34 = arith.select %32, %33, %30 : vector<16x128xi1>, vector<16x128xf32>
    %c15_i32 = arith.constant 15 : i32
    %35 = vector.broadcast %c15_i32 : i32 to vector<16x1xi32>
    %36 = arith.cmpi eq, %25, %35 : vector<16x1xi32>
    %37 = vector.extract_strided_slice %8 {offsets = [1, 0], sizes = [15, 128], strides = [1, 1]} : vector<16x128xf32> to vector<15x128xf32>
    %38 = vector.extract_strided_slice %8 {offsets = [0, 0], sizes = [1, 128], strides = [1, 1]} : vector<16x128xf32> to vector<1x128xf32>
    %39 = tpu.concatenate %37, %38 in 0 : vector<15x128xf32>, vector<1x128xf32> -> vector<16x128xf32>
    %cst_11 = arith.constant 0.000000e+00 : f32
    %40 = vector.shape_cast %36 : vector<16x1xi1> to vector<16x1xi1>
    %41 = vector.broadcast %40 : vector<16x1xi1> to vector<16x128xi1>
    %42 = vector.broadcast %cst_11 : f32 to vector<16x128xf32>
    %43 = arith.select %41, %42, %39 : vector<16x128xi1>, vector<16x128xf32>
    %44 = vector.extract_strided_slice %1 {offsets = [0, 0], sizes = [1, 128], strides = [1, 1]} : vector<8x128xf32> to vector<1x128xf32>
    %45 = vector.broadcast %44 : vector<1x128xf32> to vector<16x128xf32>
    %46 = arith.mulf %34, %45 : vector<16x128xf32>
    %47 = vector.extract_strided_slice %1 {offsets = [1, 0], sizes = [1, 128], strides = [1, 1]} : vector<8x128xf32> to vector<1x128xf32>
    %48 = vector.broadcast %47 : vector<1x128xf32> to vector<16x128xf32>
    %49 = arith.mulf %8, %48 : vector<16x128xf32>
    %50 = arith.addf %46, %49 : vector<16x128xf32>
    %51 = vector.extract_strided_slice %1 {offsets = [2, 0], sizes = [1, 128], strides = [1, 1]} : vector<8x128xf32> to vector<1x128xf32>
    %52 = vector.broadcast %51 : vector<1x128xf32> to vector<16x128xf32>
    %53 = arith.mulf %43, %52 : vector<16x128xf32>
    %54 = arith.addf %50, %53 : vector<16x128xf32>
    %55 = vector.extract_strided_slice %1 {offsets = [4, 0], sizes = [1, 128], strides = [1, 1]} : vector<8x128xf32> to vector<1x128xf32>
    %56 = vector.broadcast %55 : vector<1x128xf32> to vector<16x128xf32>
    %57 = arith.addf %54, %56 : vector<16x128xf32>
    %cst_12 = arith.constant 0.000000e+00 : f32
    %58 = vector.broadcast %cst_12 : f32 to vector<16x128xf32>
    %59 = arith.maximumf %57, %58 : vector<16x128xf32>
    %c0_13 = arith.constant 0 : index
    %c0_14 = arith.constant 0 : index
    %60 = vector.load %arg3[%c0_13, %c0_14] : memref<128x128xf32, #tpu.memory_space<vmem>>, vector<128x128xf32>
    %cst_15 = arith.constant dense<0.000000e+00> : vector<16x128xf32>
    %61 = tpu.matmul %59, %60, %cst_15 {dimension_numbers = #tpu.dot_dimension_numbers<[1], [0], [0], [1], [0, 0, 1, 1], [], []>} : vector<16x128xf32>, vector<128x128xf32>, vector<16x128xf32> -> vector<16x128xf32>
    %62 = arith.addf %0, %61 : vector<16x128xf32>
    %c0_16 = arith.constant 0 : index
    %c0_17 = arith.constant 0 : index
    %63 = vector.load %arg5[%c0_16, %c0_17] : memref<1x128xf32, #tpu.memory_space<vmem>>, vector<1x128xf32>
    %64 = vector.broadcast %63 : vector<1x128xf32> to vector<16x128xf32>
    %65 = arith.addf %62, %64 : vector<16x128xf32>
    %c0_18 = arith.constant 0 : index
    %c0_19 = arith.constant 0 : index
    %66 = vector.load %arg6[%c0_18, %c0_19] : memref<16x128xf32, #tpu.memory_space<vmem>>, vector<16x128xf32>
    tpu.vector_store %arg6[%c0_18, %c0_19], %65 {strides = array<i32>} : memref<16x128xf32, #tpu.memory_space<vmem>>, vector<16x128xf32>,
    return
  }
  func.func @transform_0(%arg0: i32) -> (i32, i32) {
    %c0_i32 = arith.constant 0 : i32
    %c0_i32_0 = arith.constant 0 : i32
    return %arg0, %c0_i32 : i32, i32
  }
  func.func @transform_1(%arg0: i32) -> (i32, i32) {
    %c0_i32 = arith.constant 0 : i32
    %c0_i32_0 = arith.constant 0 : i32
    %c0_i32_1 = arith.constant 0 : i32
    return %c0_i32, %c0_i32_0 : i32, i32
  }
  func.func @transform_2(%arg0: i32) -> (i32, i32) {
    %c0_i32 = arith.constant 0 : i32
    %c0_i32_0 = arith.constant 0 : i32
    %c0_i32_1 = arith.constant 0 : i32
    return %c0_i32, %c0_i32_0 : i32, i32
  }
  func.func @transform_3(%arg0: i32) -> (i32, i32) {
    %c0_i32 = arith.constant 0 : i32
    %c0_i32_0 = arith.constant 0 : i32
    %c0_i32_1 = arith.constant 0 : i32
    return %c0_i32, %c0_i32_0 : i32, i32
  }
  func.func @transform_4(%arg0: i32) -> (i32, i32) {
    %c0_i32 = arith.constant 0 : i32
    %c0_i32_0 = arith.constant 0 : i32
    %c0_i32_1 = arith.constant 0 : i32
    return %c0_i32, %c0_i32_0 : i32, i32
  }
  func.func @transform_5(%arg0: i32) -> (i32, i32) {
    %c0_i32 = arith.constant 0 : i32
    %c0_i32_0 = arith.constant 0 : i32
    return %arg0, %c0_i32 : i32, i32
  }
}

</mosaic_0001>

<llo_original>
// kernel: tpu_custom_call.1
$region0: #{tpu_custom_call.1}
  #allocation0 [shape = 'u32[]', space=smem, size = 0x4, offset = 0x4, fixed_abs, tag = 'smem constant byte address 0x4 - core index']
  #allocation1 [shape = 'u32[144,128]{1,0:T(1,128)}', space=vmem, size = 0x12000, scoped, tag = 'internal scratch']
  %s0 = inlined_call_operand.hbm [shape: f32[32,128], index: 0, kind: input, shape index: {}]
  %s1 = inlined_call_operand.hbm [shape: f32[128,128], index: 1, kind: input, shape index: {}]
  %s2 = inlined_call_operand.hbm [shape: f32[128,128], index: 2, kind: input, shape index: {}]
  %s3 = inlined_call_operand.vmem [shape: f32[8,128], index: 3, kind: input, shape index: {}]
  %s4 = inlined_call_operand.vmem [shape: f32[1,128], index: 4, kind: input, shape index: {}]
  %s5 = inlined_call_operand.hbm [shape: f32[32,128], index: 5, kind: output, shape index: {}]
  %s6 = sld [smem:[#allocation0]]
  $region65: #{tpu_custom_call.1} parent=0
    _
  %s8 = ssub.s32 1, %s6
  %s9 = scalar_select 0, %s8, %s6
  $region1: #{tpu_custom_call.1} parent=0
    #allocation2 [shape = 'u8[16384]{0}', space=vmem, size = 0x4000, scoped, tag = 'input window, operand 0']
    #allocation3 [shape = 's32[2]{0}', space=sflag, size = 0x8, scoped, tag = 'scoped memory for tpu_custom_call.1']
    #allocation4 [shape = 's32[2]{0}', space=sflag, size = 0x8, scoped, tag = 'scoped memory for tpu_custom_call.1']
    #allocation5 [shape = 'u8[65536]{0}', space=vmem, size = 0x10000, scoped, tag = 'input window, operand 1, single buffered']
    #allocation6 [shape = 's32[1]{0}', space=sflag, size = 0x4, scoped, tag = 'scoped memory for tpu_custom_call.1']
    #allocation7 [shape = 'u8[65536]{0}', space=vmem, size = 0x10000, scoped, tag = 'input window, operand 2, single buffered']
    #allocation8 [shape = 'u8[16384]{0}', space=vmem, size = 0x4000, scoped, tag = 'output window, operand 0']
    %10 = vsyncpa [#allocation3], 0
    %s11 = scalar_lea.sflag [#allocation3], 1
    %12 = vsyncpa %s11, 0
    %13 = vsyncpa [#allocation6], 0
    %14 = vsyncpa [#allocation4], 0
    %s15 = scalar_lea.sflag [#allocation4], 1
    %16 = vsyncpa %s15, 0
    loop: start=0, step=1, limit=4
    $region2: #{tpu_custom_call.1} parent=1 // loop_pre_header
      _
    $region3: #{tpu_custom_call.1} parent=1 // loop_header
      %s18 = sphi 0, %s22
      %p19 = scmp.ge.s32.totalorder %s18, 4
      %s28 = sphi 0, %s30
      %s31 = sphi 0, %s28
      %s32 = sphi 0, %s31
      %s48 = sphi 0, %s32
      %s52 = sphi 0, %s52
      %s54 = sphi 0, %s52
      %s55 = sphi 0, %s54
      %s69 = sphi 0, %s55
      %s73 = sphi 0, %s73
      %s75 = sphi 0, %s73
      %s76 = sphi 0, %s75
      %s90 = sphi 0, %s76
      %s94 = sphi 0, %s94
      %s96 = sphi 0, %s94
      %s97 = sphi 0, %s96
      %s111 = sphi 0, %s97
      %s115 = sphi 0, %s115
      %s117 = sphi 0, %s115
      %s118 = sphi 0, %s117
      %s132 = sphi 0, %s118
      %s138 = sphi 0, %s140
      %s141 = sphi 0, %s138
      %s142 = sphi 0, %s141
      %s158 = sphi 0, %s142
    $region4: #{tpu_custom_call.1} parent=1 // loop_header_branch
      %21 = sbr.rel (%p19) target = $region8
    $region5: #{tpu_custom_call.1} parent=1 // loop_body
      %s23 = ssub.s32 %s18, 1
      %s24 = ssub.s32 %s18, 2
      %s25 = sadd.s32 %s18, 1
      %s26 = ssub.s32 %s18, %s25
      %p27 = scmp.eq.s32.totalorder %s26, 0
      %s29 = sadd.s32 %s28, 1
      %s30 = scalar_select %p27, %s28, %s29
      %p33 = pneg %p27
      %p34 = scmp.eq.s32.totalorder %s18, 1
      %p35 = por %p33, %p34
      %p36 = scmp.ne.s32.totalorder %s28, %s31
      %p37 = scmp.eq.s32.totalorder %s18, 0
      %p38 = por %p36, %p37
      %p39 = scmp.ne.s32.totalorder %s28, %s31
      %p40 = scmp.eq.s32.totalorder %s23, 1
      %p41 = por %p39, %p40
      %p42 = scmp.ne.s32.totalorder %s31, %s32
      %p43 = scmp.eq.s32.totalorder %s23, 0
      %p44 = por %p42, %p43
      %p45 = scmp.ne.s32.totalorder %s31, %s32
      %p46 = scmp.eq.s32.totalorder %s24, 1
      %p47 = por %p45, %p46
      %p49 = scmp.ne.s32.totalorder %s32, %s48
      %p50 = scmp.eq.s32.totalorder %s24, 0
      %p51 = por %p49, %p50
      %s53 = sadd.s32 %s52, 1
      %p56 = scmp.eq.s32.totalorder %s18, 1
      %p57 = scmp.ne.s32.totalorder %s52, %s54
      %p58 = scmp.eq.s32.totalorder %s18, 0
      %p59 = por %p57, %p58
      %p60 = scmp.ne.s32.totalorder %s52, %s54
      %p61 = scmp.eq.s32.totalorder %s23, 1
      %p62 = por %p60, %p61
      %p63 = scmp.ne.s32.totalorder %s54, %s55
      %p64 = scmp.eq.s32.totalorder %s23, 0
      %p65 = por %p63, %p64
      %p66 = scmp.ne.s32.totalorder %s54, %s55
      %p67 = scmp.eq.s32.totalorder %s24, 1
      %p68 = por %p66, %p67
      %p70 = scmp.ne.s32.totalorder %s55, %s69
      %p71 = scmp.eq.s32.totalorder %s24, 0
      %p72 = por %p70, %p71
      %s74 = sadd.s32 %s73, 1
      %p77 = scmp.eq.s32.totalorder %s18, 1
      %p78 = scmp.ne.s32.totalorder %s73, %s75
      %p79 = scmp.eq.s32.totalorder %s18, 0
      %p80 = por %p78, %p79
      %p81 = scmp.ne.s32.totalorder %s73, %s75
      %p82 = scmp.eq.s32.totalorder %s23, 1
      %p83 = por %p81, %p82
      %p84 = scmp.ne.s32.totalorder %s75, %s76
      %p85 = scmp.eq.s32.totalorder %s23, 0
      %p86 = por %p84, %p85
      %p87 = scmp.ne.s32.totalorder %s75, %s76
      %p88 = scmp.eq.s32.totalorder %s24, 1
      %p89 = por %p87, %p88
      %p91 = scmp.ne.s32.totalorder %s76, %s90
      %p92 = scmp.eq.s32.totalorder %s24, 0
      %p93 = por %p91, %p92
      %s95 = sadd.s32 %s94, 1
      %p98 = scmp.eq.s32.totalorder %s18, 1
      %p99 = scmp.ne.s32.totalorder %s94, %s96
      %p100 = scmp.eq.s32.totalorder %s18, 0
      %p101 = por %p99, %p100
      %p102 = scmp.ne.s32.totalorder %s94, %s96
      %p103 = scmp.eq.s32.totalorder %s23, 1
      %p104 = por %p102, %p103
      %p105 = scmp.ne.s32.totalorder %s96, %s97
      %p106 = scmp.eq.s32.totalorder %s23, 0
      %p107 = por %p105, %p106
      %p108 = scmp.ne.s32.totalorder %s96, %s97
      %p109 = scmp.eq.s32.totalorder %s24, 1
      %p110 = por %p108, %p109
      %p112 = scmp.ne.s32.totalorder %s97, %s111
      %p113 = scmp.eq.s32.totalorder %s24, 0
      %p114 = por %p112, %p113
      %s116 = sadd.s32 %s115, 1
      %p119 = scmp.eq.s32.totalorder %s18, 1
      %p120 = scmp.ne.s32.totalorder %s115, %s117
      %p121 = scmp.eq.s32.totalorder %s18, 0
      %p122 = por %p120, %p121
      %p123 = scmp.ne.s32.totalorder %s115, %s117
      %p124 = scmp.eq.s32.totalorder %s23, 1
      %p125 = por %p123, %p124
      %p126 = scmp.ne.s32.totalorder %s117, %s118
      %p127 = scmp.eq.s32.totalorder %s23, 0
      %p128 = por %p126, %p127
      %p129 = scmp.ne.s32.totalorder %s117, %s118
      %p130 = scmp.eq.s32.totalorder %s24, 1
      %p131 = por %p129, %p130
      %p133 = scmp.ne.s32.totalorder %s118, %s132
      %p134 = scmp.eq.s32.totalorder %s24, 0
      %p135 = por %p133, %p134
      %s136 = ssub.s32 %s18, %s25
      %p137 = scmp.eq.s32.totalorder %s136, 0
      %s139 = sadd.s32 %s138, 1
      %s140 = scalar_select %p137, %s138, %s139
      %p143 = pneg %p137
      %p144 = scmp.eq.s32.totalorder %s18, 1
      %p145 = por %p143, %p144
      %p146 = scmp.ne.s32.totalorder %s138, %s141
      %p147 = scmp.eq.s32.totalorder %s18, 0
      %p148 = por %p146, %p147
      %p149 = scmp.ne.s32.totalorder %s138, %s141
      %p150 = scmp.eq.s32.totalorder %s23, 1
      %p151 = por %p149, %p150
      %p152 = scmp.ne.s32.totalorder %s141, %s142
      %p153 = scmp.eq.s32.totalorder %s23, 0
      %p154 = por %p152, %p153
      %p155 = scmp.ne.s32.totalorder %s141, %s142
      %p156 = scmp.eq.s32.totalorder %s24, 1
      %p157 = por %p155, %p156
      %p159 = scmp.ne.s32.totalorder %s142, %s158
      %p160 = scmp.eq.s32.totalorder %s24, 0
      %p161 = por %p159, %p160
      %p162 = scmp.le.s32.totalorder 1, %s18
      %p163 = scmp.lt.s32.totalorder %s18, 3
      %p164 = pnand %p162, %p163
      %p165 = pneg %p164
      // Predicated region
      $region9: #{tpu_custom_call.1} parent=5 // pred_check
        _
      $region10: #{tpu_custom_call.1} parent=5 // pred_check_branch
        %167 = sbr.rel (%p164) target = $region12
      $region11: #{tpu_custom_call.1} parent=5 // pred_region
        %s168 = ssub.s32 %s18, 1
        // Predicated region
        $region13: #{tpu_custom_call.1} parent=11 // pred_check
          %p169 = pneg %p65
        $region14: #{tpu_custom_call.1} parent=11 // pred_check_branch
          %171 = sbr.rel (%p169) target = $region16
        $region15: #{tpu_custom_call.1} parent=11 // pred_region
          %s173 = ssub.s32 2048, 2048
          %174 = vsyncadd [#allocation6], %s173
          %s175 = sshll.u32 [#allocation5], 4
          %s176 = int_to_ptr.vmem [resolvable:$true] %s175
          %181 = dma.hbm_to_vmem [thread:$0]  %s1, 2048, %s176, [#allocation6], 128, 128, 8
        $region16: #{tpu_custom_call.1} parent=11 // pred_fallthru
          _
        // Predicated region
        $region17: #{tpu_custom_call.1} parent=11 // pred_check
          %p182 = pneg %p86
        $region18: #{tpu_custom_call.1} parent=11 // pred_check_branch
          %184 = sbr.rel (%p182) target = $region20
        $region19: #{tpu_custom_call.1} parent=11 // pred_region
          %s186 = ssub.s32 2048, 2048
          %187 = vsyncadd [#allocation6], %s186
          %s188 = sshll.u32 [#allocation7], 4
          %s189 = int_to_ptr.vmem [resolvable:$true] %s188
          %194 = dma.hbm_to_vmem [thread:$0]  %s2, 2048, %s189, [#allocation6], 128, 128, 8
        $region20: #{tpu_custom_call.1} parent=11 // pred_fallthru
          _
        // Predicated region
        $region21: #{tpu_custom_call.1} parent=11 // pred_check
          %p195 = pneg %p107
        $region22: #{tpu_custom_call.1} parent=11 // pred_check_branch
          %197 = sbr.rel (%p195) target = $region24
        $region23: #{tpu_custom_call.1} parent=11 // pred_region
          _
        $region24: #{tpu_custom_call.1} parent=11 // pred_fallthru
          _
        // Predicated region
        $region25: #{tpu_custom_call.1} parent=11 // pred_check
          %p198 = pneg %p128
        $region26: #{tpu_custom_call.1} parent=11 // pred_check_branch
          %200 = sbr.rel (%p198) target = $region28
        $region27: #{tpu_custom_call.1} parent=11 // pred_region
          _
        $region28: #{tpu_custom_call.1} parent=11 // pred_fallthru
          _
      $region12: #{tpu_custom_call.1} parent=5 // pred_fallthru
        _
      %p201 = scmp.lt.s32.totalorder %s18, 2
      // Predicated region
      $region29: #{tpu_custom_call.1} parent=5 // pred_check
        %p202 = pneg %p201
      $region30: #{tpu_custom_call.1} parent=5 // pred_check_branch
        %204 = sbr.rel (%p202) target = $region32
      $region31: #{tpu_custom_call.1} parent=5 // pred_region
        // Predicated region
        $region33: #{tpu_custom_call.1} parent=31 // pred_check
          %p205 = pneg %p38
        $region34: #{tpu_custom_call.1} parent=31 // pred_check_branch
          %207 = sbr.rel (%p205) target = $region36
        $region35: #{tpu_custom_call.1} parent=31 // pred_region
          %s208 = sand.u32 %s28, 1
          %s209 = scalar_lea.sflag [#allocation3], %s208
          %s210 = sand.u32 %s28, 1
          %s211 = smul.addr %s210, 16
          %s212 = scalar_lea.vmem [#allocation2], %s211
          %s213 = smul.u32 2, %s18
          %s215 = ssub.s32 256, 256
          %216 = vsyncadd %s209, %s215
          %s217 = smul.addr %s213, 128
          %s218 = scalar_lea.hbm %s0, %s217
          %s219 = sshll.u32 %s212, 4
          %s220 = int_to_ptr.vmem [resolvable:$true] %s219
          %225 = dma.hbm_to_vmem [thread:$0]  %s218, 256, %s220, %s209, 128, 128, 8
        $region36: #{tpu_custom_call.1} parent=31 // pred_fallthru
          _
      $region32: #{tpu_custom_call.1} parent=5 // pred_fallthru
        _
      %p226 = scmp.le.s32.totalorder 1, %s18
      %p227 = scmp.lt.s32.totalorder %s18, 3
      %p228 = pnand %p226, %p227
      %p229 = pneg %p228
      // Predicated region
      $region37: #{tpu_custom_call.1} parent=5 // pred_check
        _
      $region38: #{tpu_custom_call.1} parent=5 // pred_check_branch
        %231 = sbr.rel (%p228) target = $region40
      $region39: #{tpu_custom_call.1} parent=5 // pred_region
        %s232 = ssub.s32 %s18, 1
        %s233 = sand.u32 %s31, 1
        %s234 = scalar_lea.sflag [#allocation3], %s233
        %s235 = sand.u32 %s31, 1
        %s236 = smul.addr %s235, 16
        %s237 = scalar_lea.vmem [#allocation2], %s236
        // Predicated region
        $region41: #{tpu_custom_call.1} parent=39 // pred_check
          %p238 = pneg %p44
        $region42: #{tpu_custom_call.1} parent=39 // pred_check_branch
          %240 = sbr.rel (%p238) target = $region44
        $region43: #{tpu_custom_call.1} parent=39 // pred_region
          %241 = dma.done %s234, 256
        $region44: #{tpu_custom_call.1} parent=39 // pred_fallthru
          _
        // Predicated region
        $region45: #{tpu_custom_call.1} parent=39 // pred_check
          %p242 = pneg %p65
        $region46: #{tpu_custom_call.1} parent=39 // pred_check_branch
          %244 = sbr.rel (%p242) target = $region48
        $region47: #{tpu_custom_call.1} parent=39 // pred_region
          %245 = dma.done [#allocation6], 2048
        $region48: #{tpu_custom_call.1} parent=39 // pred_fallthru
          _
        // Predicated region
        $region49: #{tpu_custom_call.1} parent=39 // pred_check
          %p246 = pneg %p86
        $region50: #{tpu_custom_call.1} parent=39 // pred_check_branch
          %248 = sbr.rel (%p246) target = $region52
        $region51: #{tpu_custom_call.1} parent=39 // pred_region
          %249 = dma.done [#allocation6], 2048
        $region52: #{tpu_custom_call.1} parent=39 // pred_fallthru
          _
        %s250 = sand.u32 %s31, 1
        %s251 = scalar_lea.sflag [#allocation3], %s250
        %s252 = sand.u32 %s31, 1
        %s253 = smul.addr %s252, 16
        %s254 = scalar_lea.vmem [#allocation2], %s253
        %p255 = pneg %p44
        %p256 = pneg %p41
        %p257 = pneg %p65
        %p258 = pneg %p62
        %p259 = pneg %p86
        %p260 = pneg %p83
        %p261 = pneg %p107
        %p262 = pneg %p104
        %p263 = pneg %p128
        %p264 = pneg %p125
        %p265 = pneg %p154
        %p266 = pneg %p151
        %s267 = sand.u32 %s141, 1
        %s268 = scalar_lea.sflag [#allocation4], %s267
        %s269 = sand.u32 %s141, 1
        %s270 = smul.addr %s269, 16
        %s271 = scalar_lea.vmem [#allocation8], %s270
        %s272 = smul.u32 2, %s23
        %s273 = smul.u32 2, %s23
        %v274 = vld [vmem:[%s237] sm:$0xff]
        %v275 = vld [vmem:[%s237 + $0x8] sm:$0xff]
        %v276 = vld [vmem:[%s3] sm:$0xff]
        %v277 = vld [vmem:[#allocation5] sm:$0xff]
        %v278 = vld [vmem:[#allocation5 + $0x8] sm:$0xff]
        %v279 = vld [vmem:[#allocation5 + $0x10] sm:$0xff]
        %v280 = vld [vmem:[#allocation5 + $0x18] sm:$0xff]
        %v281 = vld [vmem:[#allocation5 + $0x20] sm:$0xff]
        %v282 = vld [vmem:[#allocation5 + $0x28] sm:$0xff]
        %v283 = vld [vmem:[#allocation5 + $0x30] sm:$0xff]
        %v284 = vld [vmem:[#allocation5 + $0x38] sm:$0xff]
        %v285 = vld [vmem:[#allocation5 + $0x40] sm:$0xff]
        %v286 = vld [vmem:[#allocation5 + $0x48] sm:$0xff]
        %v287 = vld [vmem:[#allocation5 + $0x50] sm:$0xff]
        %v288 = vld [vmem:[#allocation5 + $0x58] sm:$0xff]
        %v289 = vld [vmem:[#allocation5 + $0x60] sm:$0xff]
        %v290 = vld [vmem:[#allocation5 + $0x68] sm:$0xff]
        %v291 = vld [vmem:[#allocation5 + $0x70] sm:$0xff]
        %v292 = vld [vmem:[#allocation5 + $0x78] sm:$0xff]
        %v293 = vlaneseq
        %v294 = vshrl.u32 %v293, 7
        %v295 = vsub.s32 3, %v294
        %v296 = vrot.slane %v276, %v295
        %297 = vmatprep.subr.mxu0 0.0
        %298 = vmatpush1.msra.mxu0 %v277
        %299 = vmatprep.subr.mxu0 0.0
        %300 = vmatpush1.msra.mxu0 %v278
        %301 = vmatprep.subr.mxu0 0.0
        %302 = vmatpush1.msra.mxu0 %v279
        %303 = vmatprep.subr.mxu0 0.0
        %304 = vmatpush1.msra.mxu0 %v280
        %305 = vmatprep.subr.mxu0 0.0
        %306 = vmatpush1.msra.mxu0 %v281
        %307 = vmatprep.subr.mxu0 0.0
        %308 = vmatpush1.msra.mxu0 %v282
        %309 = vmatprep.subr.mxu0 0.0
        %310 = vmatpush1.msra.mxu0 %v283
        %311 = vmatprep.subr.mxu0 0.0
        %312 = vmatpush1.msra.mxu0 %v284
        %313 = vmatprep.subr.mxu0 0.0
        %314 = vmatpush1.msra.mxu0 %v285
        %315 = vmatprep.subr.mxu0 0.0
        %316 = vmatpush1.msra.mxu0 %v286
        %317 = vmatprep.subr.mxu0 0.0
        %318 = vmatpush1.msra.mxu0 %v287
        %319 = vmatprep.subr.mxu0 0.0
        %320 = vmatpush1.msra.mxu0 %v288
        %321 = vmatprep.subr.mxu0 0.0
        %322 = vmatpush1.msra.mxu0 %v289
        %323 = vmatprep.subr.mxu0 0.0
        %324 = vmatpush1.msra.mxu0 %v290
        %325 = vmatprep.subr.mxu0 0.0
        %326 = vmatpush1.msra.mxu0 %v291
        %327 = vmatprep.subr.mxu0 0.0
        %328 = vmatpush1.msra.mxu0 %v292
        %329 = vmatprep.subr.mxu0 0.0
        %330 = vmatpush1.msra.mxu0 0.0
        %331 = vmatprep.subr.mxu0 0.0
        %332 = vmatpush1.msra.mxu0 0.0
        %333 = vmatprep.subr.mxu0 0.0
        %334 = vmatpush1.msra.mxu0 0.0
        %335 = vmatprep.subr.mxu0 0.0
        %336 = vmatpush1.msra.mxu0 0.0
        %337 = vmatprep.subr.mxu0 0.0
        %338 = vmatpush1.msra.mxu0 0.0
        %339 = vmatprep.subr.mxu0 0.0
        %340 = vmatpush1.msra.mxu0 0.0
        %341 = vmatprep.subr.mxu0 0.0
        %342 = vmatpush1.msra.mxu0 0.0
        %343 = vmatprep.subr.mxu0 0.0
        %344 = vmatpush1.msra.mxu0 0.0
        %345 = vmatprep.subr.mxu0 0.0
        %346 = vmatpush1.msra.mxu0 0.0
        %347 = vmatprep.subr.mxu0 0.0
        %348 = vmatpush1.msra.mxu0 0.0
        %349 = vmatprep.subr.mxu0 0.0
        %350 = vmatpush1.msra.mxu0 0.0
        %351 = vmatprep.subr.mxu0 0.0
        %352 = vmatpush1.msra.mxu0 0.0
        %353 = vmatprep.subr.mxu0 0.0
        %354 = vmatpush1.msra.mxu0 0.0
        %355 = vmatprep.subr.mxu0 0.0
        %356 = vmatpush1.msra.mxu0 0.0
        %357 = vmatprep.subr.mxu0 0.0
        %358 = vmatpush1.msra.mxu0 0.0
        %359 = vmatprep.subr.mxu0 0.0
        %360 = vmatpush1.msra.mxu0 0.0
        %361 = vmatprep.mubr.f32.mxu0 0.0
        %362 = vmatmul.mubr.f32.gmra.mrb[0].mxu0 %v274
        %v363 = vpop.f32.mrb[0].mxu0
        %v364 = vadd.f32 %v296, %v363
        %v365 = vpop.f32.mrb[0].mxu0
        %366 = vmatprep.mubr.f32.mxu0 0.0
        %367 = vmatmul.mubr.f32.gmra.mrb[0].mxu0 %v275
        %v368 = vpop.f32.mrb[0].mxu0
        %v369 = vadd.f32 %v296, %v368
        %v370 = vpop.f32.mrb[0].mxu0
        %371 = vdwg.mxu0
        %v372 = vmax.f32 %v364, 0.0
        %v373 = vmax.f32 %v369, 0.0
        %v374 = vlaneseq
        %v375 = vshrl.u32 %v374, 7
        %v376 = vadd.s32 %v375, 8
        %vm377 = vcmp.lt.s32.totalorder %v375, 0
        %v378 = vsub.s32 0, %v375
        %v379 = vsel %vm377, %v378, %v375
        %v380 = vshrl.u32 %v379, 4
        %v381 = vand.u32 %v379, 15
        %v382 = vsub.s32 0, %v381
        %v383 = vsel %vm377, %v382, %v381
        %vm384 = vcmp.lt.s32.totalorder %v376, 0
        %v385 = vsub.s32 0, %v376
        %v386 = vsel %vm384, %v385, %v376
        %v387 = vshrl.u32 %v386, 4
        %v388 = vand.u32 %v386, 15
        %v389 = vsub.s32 0, %v388
        %v390 = vsel %vm384, %v389, %v388
        %vm391 = vcmp.ne.s32.totalorder %v383, 0
        %vm392 = vcmp.ne.s32.totalorder %v390, 0
        %vm393 = vcmp.lt.s32.totalorder %v383, 0
        %vm394 = vcmp.lt.s32.totalorder %v390, 0
        %vm395 = vmand %vm393, %vm391
        %vm396 = vmand %vm394, %vm392
        %v397 = vadd.s32 %v383, 16
        %v398 = vadd.s32 %v390, 16
        %v399 = vsel %vm395, %v397, %v383
        %v400 = vsel %vm396, %v398, %v390
        %vm401 = vcmp.eq.s32.totalorder %v399, 0
        %vm402 = vcmp.eq.s32.totalorder %v400, 0
        %v404 = vrot.slane %v373, 7
        %vm407 = vcmask 1040384
        %v408 = vrot.slane %v372, 7
        %v409 = vsel %vm407, %v408, %v404
        %v412 = vsel %vm407, %v404, %v408
        %v413 = vsel %vm401, 1, 0
        %v414 = vsel %vm402, 1, 0
        %vm415 = vcmp.eq.s32.totalorder %v413, 1
        %vm416 = vcmp.eq.s32.totalorder %v414, 1
        %v417 = vsel %vm415, 0.0, %v412
        %v418 = vsel %vm416, 0.0, %v409
        %vm419 = vcmp.eq.s32.totalorder %v399, 15
        %vm420 = vcmp.eq.s32.totalorder %v400, 15
        %vm421 = vcmask 1046528
        %v422 = vrot.slane %v372, 1
        %v423 = vrot.slane %v373, 1
        %v424 = vsel %vm421, %v422, %v423
        %v428 = vsel %vm421, %v423, %v422
        %v429 = vsel %vm419, 1, 0
        %v430 = vsel %vm420, 1, 0
        %vm431 = vcmp.eq.s32.totalorder %v429, 1
        %vm432 = vcmp.eq.s32.totalorder %v430, 1
        %v433 = vsel %vm431, 0.0, %v424
        %v434 = vsel %vm432, 0.0, %v428
        %v435 = vlaneseq
        %v436 = vshrl.u32 %v435, 7
        %v437 = vsub.s32 0, %v436
        %v438 = vrot.slane %v276, %v437
        %v439 = vmul.f32 %v417, %v438
        %v440 = vmul.f32 %v418, %v438
        %v441 = vlaneseq
        %v442 = vshrl.u32 %v441, 7
        %v443 = vsub.s32 1, %v442
        %v444 = vrot.slane %v276, %v443
        %v445 = vmul.f32 %v372, %v444
        %v446 = vmul.f32 %v373, %v444
        %v447 = vadd.f32 %v439, %v445
        %v448 = vadd.f32 %v440, %v446
        %v449 = vlaneseq
        %v450 = vshrl.u32 %v449, 7
        %v451 = vsub.s32 2, %v450
        %v452 = vrot.slane %v276, %v451
        %v453 = vmul.f32 %v433, %v452
        %v454 = vmul.f32 %v434, %v452
        %v455 = vadd.f32 %v447, %v453
        %v456 = vadd.f32 %v448, %v454
        %v457 = vlaneseq
        %v458 = vshrl.u32 %v457, 7
        %v459 = vsub.s32 4, %v458
        %v460 = vrot.slane %v276, %v459
        %v461 = vadd.f32 %v455, %v460
        %v462 = vadd.f32 %v456, %v460
        %v463 = vmax.f32 %v461, 0.0
        %v464 = vmax.f32 %v462, 0.0
        %v465 = vld [vmem:[#allocation7] sm:$0xff]
        %v466 = vld [vmem:[#allocation7 + $0x8] sm:$0xff]
        %v467 = vld [vmem:[#allocation7 + $0x10] sm:$0xff]
        %v468 = vld [vmem:[#allocation7 + $0x18] sm:$0xff]
        %v469 = vld [vmem:[#allocation7 + $0x20] sm:$0xff]
        %v470 = vld [vmem:[#allocation7 + $0x28] sm:$0xff]
        %v471 = vld [vmem:[#allocation7 + $0x30] sm:$0xff]
        %v472 = vld [vmem:[#allocation7 + $0x38] sm:$0xff]
        %v473 = vld [vmem:[#allocation7 + $0x40] sm:$0xff]
        %v474 = vld [vmem:[#allocation7 + $0x48] sm:$0xff]
        %v475 = vld [vmem:[#allocation7 + $0x50] sm:$0xff]
        %v476 = vld [vmem:[#allocation7 + $0x58] sm:$0xff]
        %v477 = vld [vmem:[#allocation7 + $0x60] sm:$0xff]
        %v478 = vld [vmem:[#allocation7 + $0x68] sm:$0xff]
        %v479 = vld [vmem:[#allocation7 + $0x70] sm:$0xff]
        %v480 = vld [vmem:[#allocation7 + $0x78] sm:$0xff]
        %481 = vmatprep.subr.mxu0 0.0
        %482 = vmatpush1.msra.mxu0 %v465
        %483 = vmatprep.subr.mxu0 0.0
        %484 = vmatpush1.msra.mxu0 %v466
        %485 = vmatprep.subr.mxu0 0.0
        %486 = vmatpush1.msra.mxu0 %v467
        %487 = vmatprep.subr.mxu0 0.0
        %488 = vmatpush1.msra.mxu0 %v468
        %489 = vmatprep.subr.mxu0 0.0
        %490 = vmatpush1.msra.mxu0 %v469
        %491 = vmatprep.subr.mxu0 0.0
        %492 = vmatpush1.msra.mxu0 %v470
        %493 = vmatprep.subr.mxu0 0.0
        %494 = vmatpush1.msra.mxu0 %v471
        %495 = vmatprep.subr.mxu0 0.0
        %496 = vmatpush1.msra.mxu0 %v472
        %497 = vmatprep.subr.mxu0 0.0
        %498 = vmatpush1.msra.mxu0 %v473
        %499 = vmatprep.subr.mxu0 0.0
        %500 = vmatpush1.msra.mxu0 %v474
        %501 = vmatprep.subr.mxu0 0.0
        %502 = vmatpush1.msra.mxu0 %v475
        %503 = vmatprep.subr.mxu0 0.0
        %504 = vmatpush1.msra.mxu0 %v476
        %505 = vmatprep.subr.mxu0 0.0
        %506 = vmatpush1.msra.mxu0 %v477
        %507 = vmatprep.subr.mxu0 0.0
        %508 = vmatpush1.msra.mxu0 %v478
        %509 = vmatprep.subr.mxu0 0.0
        %510 = vmatpush1.msra.mxu0 %v479
        %511 = vmatprep.subr.mxu0 0.0
        %512 = vmatpush1.msra.mxu0 %v480
        %513 = vmatprep.subr.mxu0 0.0
        %514 = vmatpush1.msra.mxu0 0.0
        %515 = vmatprep.subr.mxu0 0.0
        %516 = vmatpush1.msra.mxu0 0.0
        %517 = vmatprep.subr.mxu0 0.0
        %518 = vmatpush1.msra.mxu0 0.0
        %519 = vmatprep.subr.mxu0 0.0
        %520 = vmatpush1.msra.mxu0 0.0
        %521 = vmatprep.subr.mxu0 0.0
        %522 = vmatpush1.msra.mxu0 0.0
        %523 = vmatprep.subr.mxu0 0.0
        %524 = vmatpush1.msra.mxu0 0.0
        %525 = vmatprep.subr.mxu0 0.0
        %526 = vmatpush1.msra.mxu0 0.0
        %527 = vmatprep.subr.mxu0 0.0
        %528 = vmatpush1.msra.mxu0 0.0
        %529 = vmatprep.subr.mxu0 0.0
        %530 = vmatpush1.msra.mxu0 0.0
        %531 = vmatprep.subr.mxu0 0.0
        %532 = vmatpush1.msra.mxu0 0.0
        %533 = vmatprep.subr.mxu0 0.0
        %534 = vmatpush1.msra.mxu0 0.0
        %535 = vmatprep.subr.mxu0 0.0
        %536 = vmatpush1.msra.mxu0 0.0
        %537 = vmatprep.subr.mxu0 0.0
        %538 = vmatpush1.msra.mxu0 0.0
        %539 = vmatprep.subr.mxu0 0.0
        %540 = vmatpush1.msra.mxu0 0.0
        %541 = vmatprep.subr.mxu0 0.0
        %542 = vmatpush1.msra.mxu0 0.0
        %543 = vmatprep.subr.mxu0 0.0
        %544 = vmatpush1.msra.mxu0 0.0
        %545 = vmatprep.mubr.f32.mxu0 0.0
        %546 = vmatmul.mubr.f32.gmra.mrb[0].mxu0 %v463
        %v547 = vpop.f32.mrb[0].mxu0
        %v548 = vadd.f32 0.0, %v547
        %v549 = vpop.f32.mrb[0].mxu0
        %550 = vmatprep.mubr.f32.mxu0 0.0
        %551 = vmatmul.mubr.f32.gmra.mrb[0].mxu0 %v464
        %v552 = vpop.f32.mrb[0].mxu0
        %v553 = vadd.f32 0.0, %v552
        %v554 = vpop.f32.mrb[0].mxu0
        %555 = vdwg.mxu0
        %v556 = vadd.f32 %v274, %v548
        %v557 = vadd.f32 %v275, %v553
        %v558 = vld [vmem:[%s4] sm:$0x1]
        %v560 = vlaneseq
        %v561 = vshrl.u32 %v560, 7
        %v562 = vsub.s32 0, %v561
        %v563 = vrot.slane %v558, %v562
        %v565 = vadd.f32 %v556, %v563
        %v566 = vadd.f32 %v557, %v563
        %567 = vst [vmem:[%s271] sm:$0xff] %v565
        %568 = vst [vmem:[%s271 + $0x8] sm:$0xff] %v566
        %s569 = sand.u32 %s141, 1
        %s570 = scalar_lea.sflag [#allocation4], %s569
        %s571 = sand.u32 %s141, 1
        %s572 = smul.addr %s571, 16
        %s573 = scalar_lea.vmem [#allocation8], %s572
        // Predicated region
        $region53: #{tpu_custom_call.1} parent=39 // pred_check
          %p574 = pneg %p151
        $region54: #{tpu_custom_call.1} parent=39 // pred_check_branch
          %576 = sbr.rel (%p574) target = $region56
        $region55: #{tpu_custom_call.1} parent=39 // pred_region
          %s577 = smul.u32 2, %s23
          %s579 = ssub.s32 256, 256
          %580 = vsyncadd %s570, %s579
          %s581 = smul.addr %s577, 128
          %s582 = scalar_lea.hbm %s5, %s581
          %s583 = sshll.u32 %s573, 4
          %s584 = int_to_ptr.vmem [resolvable:$true] %s583
          %589 = dma.vmem_to_hbm [thread:$0]  %s584, 256, %s582, %s570, 128, 128, 8
        $region56: #{tpu_custom_call.1} parent=39 // pred_fallthru
          _
      $region40: #{tpu_custom_call.1} parent=5 // pred_fallthru
        _
      %p590 = scmp.le.s32.totalorder 2, %s18
      // Predicated region
      $region57: #{tpu_custom_call.1} parent=5 // pred_check
        %p591 = pneg %p590
      $region58: #{tpu_custom_call.1} parent=5 // pred_check_branch
        %593 = sbr.rel (%p591) target = $region60
      $region59: #{tpu_custom_call.1} parent=5 // pred_region
        %s594 = ssub.s32 %s18, 2
        // Predicated region
        $region61: #{tpu_custom_call.1} parent=59 // pred_check
          %p595 = pneg %p157
        $region62: #{tpu_custom_call.1} parent=59 // pred_check_branch
          %597 = sbr.rel (%p595) target = $region64
        $region63: #{tpu_custom_call.1} parent=59 // pred_region
          %s598 = sand.u32 %s142, 1
          %s599 = scalar_lea.sflag [#allocation4], %s598
          %s600 = sand.u32 %s142, 1
          %s601 = smul.addr %s600, 16
          %s602 = scalar_lea.vmem [#allocation8], %s601
          %603 = dma.done %s599, 256
        $region64: #{tpu_custom_call.1} parent=59 // pred_fallthru
          _
      $region60: #{tpu_custom_call.1} parent=5 // pred_fallthru
        _
    $region6: #{tpu_custom_call.1} parent=1 // loop_footer
      %s22 = sadd.s32 1, %s18
    $region7: #{tpu_custom_call.1} parent=1 // loop_footer_branch
      %17 = sbr.rel target = $region3
    $region8: #{tpu_custom_call.1} parent=1 // loop_exit
      _
    %604 = vsyncpa [#allocation3], 1
    %s605 = scalar_lea.sflag [#allocation3], 1
    %606 = vsyncpa %s605, 1
    %607 = vsyncpa [#allocation6], 1
    %608 = vsyncpa [#allocation4], 1
    %s609 = scalar_lea.sflag [#allocation4], 1
    %610 = vsyncpa %s609, 1

</llo_original>
